<compile_context>
chip_gen: v5e
topology: v5e:2x2
jax: 0.10.0
libtpu: 0.0.40
codegen_flags: <defaults>
</compile_context>

<pallas_src>
import functools

import jax
import jax.numpy as jnp
from jax.experimental import pallas as pl
from jax.experimental.pallas import tpu as pltpu


_VMEM_TARGET_BYTES = 32 * 1024 * 1024   # working-set target (fits v7x 64 MiB/TC)
_VMEM_LIMIT_BYTES = 48 * 1024 * 1024    # scoped limit handed to Mosaic


def _round_up(x, m):
    return (x + m - 1) // m * m


def _edge_mlp_kernel(x_ref, w1_ref, b1_ref, w2_ref, b2_ref, out_ref,
                     *, apply_sigmoid: bool):
    # x_ref:  [TM, input_size]  (original dtype, cast to bf16 here, not in wrapper)
    # w1_ref: [input_size, hidden]   b1_ref: [1, hidden]   (bias f32)
    # w2_ref: [hidden, n_pad]        b2_ref: [1, n_pad]    (bias f32)
    # out_ref:[TM, n_pad]            (lane-dense: n_pad % 128 == 0)
    xc = x_ref[...].astype(w1_ref.dtype)          # VPU cast, hidden under DMA/MXU
    h = jnp.dot(xc, w1_ref[...],
                preferred_element_type=jnp.float32) + b1_ref[...]
    h = jnp.maximum(h, 0.0)                       # ReLU (f32, VPU)
    y = jnp.dot(h.astype(w2_ref.dtype), w2_ref[...],
                preferred_element_type=jnp.float32) + b2_ref[...]
    if apply_sigmoid:
        y = 1.0 / (1.0 + jnp.exp(-y))             # exact sigmoid; exp on EUP
    out_ref[...] = y.astype(out_ref.dtype)


def prepare_edge_mlp_params(w1, b1, w2, b2, *, compute_dtype=jnp.bfloat16):
    """Cast + lane-pad parameters ONCE (hoist out of the per-step path).

    w1: [input_size, hidden]   b1: [hidden]
    w2: [hidden, out_features] b2: [out_features]
    """
    cd = jnp.dtype(compute_dtype)
    hidden = w1.shape[1]
    out_features = w2.shape[1]
    n_pad = _round_up(out_features, 128)          # lane-dense output stores
    return {
        "w1": w1.astype(cd),
        "b1": b1.reshape(1, hidden).astype(jnp.float32),
        "w2": jnp.pad(w2, ((0, 0), (0, n_pad - out_features))).astype(cd),
        "b2": jnp.pad(b2, (0, n_pad - out_features)).reshape(1, n_pad)
                 .astype(jnp.float32),
        "out_features": out_features,
    }


def _choose_tile_m(M, input_size, hidden, n_pad, in_bytes, cd_bytes, out_bytes,
                   tile_m_max):
    """Pick the row tile from an explicit VMEM budget (conservative model)."""
    # Constant-index weight/bias blocks, counted at 2 buffers to be safe.
    fixed = (2 * (input_size * hidden + hidden * n_pad) * cd_bytes
             + 2 * (hidden + n_pad) * 4)
    per_row = (2 * input_size * in_bytes          # double-buffered x tiles
               + 2 * n_pad * out_bytes            # double-buffered out tiles
               + hidden * (4 + cd_bytes)          # h (f32) + its bf16 copy
               + n_pad * 4)                       # y (f32) before store cast
    budget = max(_VMEM_TARGET_BYTES - fixed, 16 * per_row)
    tm = budget // per_row
    # Keep the h intermediate under ~8 MiB so it never drives spills.
    tm = min(tm, (8 * 1024 * 1024) // max(hidden * (4 + cd_bytes), 1))
    tm = min(tm, tile_m_max)
    # v7x megacore: for mid-size M make sure the 'parallel' axis has >1 step.
    if M >= 2 * 512:
        tm = min(tm, max(512, _round_up(pl.cdiv(M, 8), 128)))
    tm = min(tm, _round_up(M, 16))
    tm = max(16, (int(tm) // 16) * 16)            # bf16 sublane-packing multiple
    return tm


def edge_level_mlp(x, params, *, edge_feature_len=1, return_logits=False,
                   out_dtype=jnp.bfloat16, tile_m=1024):
    """Pallas implementation of EdgeLevelMLP.forward.

    x:      [batch, seq_len, input_size]  (any float dtype; cast in-kernel)
    params: output of prepare_edge_mlp_params
    returns [batch, seq_len, output_size, edge_feature_len] in `out_dtype`.
    """
    batch, seq_len, input_size = x.shape
    w1c, b1c, w2c, b2c = params["w1"], params["b1"], params["w2"], params["b2"]
    out_features = params["out_features"]
    hidden = w1c.shape[1]
    n_pad = w2c.shape[1]
    assert out_features % edge_feature_len == 0, \
        "output features must be divisible by edge_feature_len"

    M = batch * seq_len
    cd_bytes = jnp.dtype(w1c.dtype).itemsize
    out_bytes = jnp.dtype(out_dtype).itemsize
    in_bytes = jnp.dtype(x.dtype).itemsize

    tm = _choose_tile_m(M, input_size, hidden, n_pad,
                        in_bytes, cd_bytes, out_bytes, tile_m)
    grid_m = pl.cdiv(M, tm)                       # ragged last tile handled by Pallas

    x2d = x.reshape(M, input_size)                # metadata-only reshape, no HBM pass

    apply_sigmoid = not return_logits
    kernel = functools.partial(_edge_mlp_kernel, apply_sigmoid=apply_sigmoid)

    cost = pl.CostEstimate(
        flops=2 * M * (input_size * hidden + hidden * n_pad),
        transcendentals=(M * n_pad) if apply_sigmoid else 0,
        bytes_accessed=(M * input_size * in_bytes
                        + (w1c.size + w2c.size) * cd_bytes
                        + (b1c.size + b2c.size) * 4
                        + M * n_pad * out_bytes),
    )

    out2d = pl.pallas_call(
        kernel,
        out_shape=jax.ShapeDtypeStruct((M, n_pad), out_dtype),
        grid_spec=pltpu.PrefetchScalarGridSpec(
            num_scalar_prefetch=0,
            grid=(grid_m,),
            in_specs=[
                pl.BlockSpec((tm, input_size), lambda i: (i, 0)),      # x rows
                pl.BlockSpec((input_size, hidden), lambda i: (0, 0)),  # w1
                pl.BlockSpec((1, hidden), lambda i: (0, 0)),           # b1
                pl.BlockSpec((hidden, n_pad), lambda i: (0, 0)),       # w2 (padded)
                pl.BlockSpec((1, n_pad), lambda i: (0, 0)),            # b2 (padded)
            ],
            out_specs=pl.BlockSpec((tm, n_pad), lambda i: (i, 0)),
        ),
        compiler_params=pltpu.CompilerParams(
            dimension_semantics=("parallel",),     # megacore sharding on v7x
            vmem_limit_bytes=_VMEM_LIMIT_BYTES),
        cost_estimate=cost,
    )(x2d, w1c, b1c, w2c, b2c)

    # Slice only along lanes (no M padding existed); done after the dtype is
    # already `out_dtype`, so this residual copy is half the f32 cost.
    out = out2d[:, :out_features]
    return out.reshape(batch, seq_len, -1, edge_feature_len)


def init_params(key, input_size, hidden_size, output_size, edge_feature_len):
    """Deterministic parameter init (uniform, PyTorch-Linear-like scale)."""
    k1, k2, k3, k4 = jax.random.split(key, 4)
    lim1 = 1.0 / (input_size ** 0.5)
    lim2 = 1.0 / (hidden_size ** 0.5)
    out_features = output_size * edge_feature_len
    # Stored pre-transposed: [in, out]
    w1 = jax.random.uniform(k1, (input_size, hidden_size), jnp.float32, -lim1, lim1)
    b1 = jax.random.uniform(k2, (hidden_size,), jnp.float32, -lim1, lim1)
    w2 = jax.random.uniform(k3, (hidden_size, out_features), jnp.float32, -lim2, lim2)
    b2 = jax.random.uniform(k4, (out_features,), jnp.float32, -lim2, lim2)
    return w1, b1, w2, b2


def _reference(x, w1, b1, w2, b2, edge_feature_len, return_logits, compute_dtype):
    """Pure-JAX reference with the same quantization contract as the kernel."""
    cd = jnp.dtype(compute_dtype)
    xc = x.astype(cd).astype(jnp.float32)
    w1c = w1.astype(cd).astype(jnp.float32)
    w2c = w2.astype(cd).astype(jnp.float32)
    h = jnp.maximum(xc @ w1c + b1.astype(jnp.float32), 0.0)
    y = h.astype(cd).astype(jnp.float32) @ w2c + b2.astype(jnp.float32)
    if not return_logits:
        y = jax.nn.sigmoid(y)
    return y.reshape(x.shape[0], x.shape[1], -1, edge_feature_len)


if __name__ == "__main__":
    key = jax.random.PRNGKey(0)
    kx, kp, kx2 = jax.random.split(key, 3)

    # Small shapes consistent with the module's forward.
    batch, seq_len = 2, 8
    input_size, hidden_size, output_size, edge_feature_len = 32, 64, 16, 1

    x = jax.random.normal(kx, (batch, seq_len, input_size), jnp.float32)
    w1, b1, w2, b2 = init_params(kp, input_size, hidden_size,
                                 output_size, edge_feature_len)
    params = prepare_edge_mlp_params(w1, b1, w2, b2)   # cast/pad once, reused below

    # 1) Sigmoid path, bf16 output (default fast path).
    out = jax.block_until_ready(
        edge_level_mlp(x, params, edge_feature_len=edge_feature_len,
                       return_logits=False))
    ref = _reference(x, w1, b1, w2, b2, edge_feature_len, False, jnp.bfloat16)
    assert out.shape == (batch, seq_len, output_size, edge_feature_len)
    assert jnp.allclose(out.astype(jnp.float32), ref, atol=1e-2, rtol=1e-2)

    # 2) Logits path, f32 output.
    logits = jax.block_until_ready(
        edge_level_mlp(x, params, edge_feature_len=edge_feature_len,
                       return_logits=True, out_dtype=jnp.float32))
    ref_l = _reference(x, w1, b1, w2, b2, edge_feature_len, True, jnp.bfloat16)
    assert logits.shape == (batch, seq_len, output_size, edge_feature_len)
    assert jnp.allclose(logits, ref_l, atol=5e-3, rtol=5e-3)

    # 3) edge_feature_len > 1: same kernel output, different trailing reshape.
    out_ef2 = jax.block_until_ready(
        edge_level_mlp(x, params, edge_feature_len=2, return_logits=False))
    assert out_ef2.shape == (batch, seq_len, output_size // 2, 2)
    assert jnp.array_equal(out_ef2.reshape(batch, seq_len, -1),
                           out.reshape(batch, seq_len, -1))

    # 4) Larger M: multi-tile grid with a ragged (unpadded) last row block.
    batch2, seq2 = 3, 300            # M = 900, tile_m=512 -> grid=(2,), overhang
    xb = jax.random.normal(kx2, (batch2, seq2, input_size), jnp.float32)
    outb = jax.block_until_ready(
        edge_level_mlp(xb, params, edge_feature_len=edge_feature_len,
                       return_logits=False, tile_m=512))
    refb = _reference(xb, w1, b1, w2, b2, edge_feature_len, False, jnp.bfloat16)
    assert outb.shape == (batch2, seq2, output_size, edge_feature_len)
    assert jnp.allclose(outb.astype(jnp.float32), refb, atol=1e-2, rtol=1e-2)

    print("KERNEL_OK")
</pallas_src>

<mosaic_0001>
module attributes {stable_mosaic.version = 11 : i64} {
  func.func @_edge_mlp_kernel(%arg0: i32, %arg1: memref<16x32xf32, #tpu.memory_space<vmem>>, %arg2: memref<32x64xbf16, #tpu.memory_space<vmem>>, %arg3: memref<1x64xf32, #tpu.memory_space<vmem>>, %arg4: memref<64x128xbf16, #tpu.memory_space<vmem>>, %arg5: memref<1x128xf32, #tpu.memory_space<vmem>>, %arg6: memref<16x128xbf16, #tpu.memory_space<vmem>>) attributes {dimension_semantics = [#tpu.dimension_semantics<parallel>], iteration_bounds = array<i64: 1>, scalar_prefetch = 0 : i64, scratch_operands = 0 : i64, tpu.core_type = #tpu.core_type<tc>, window_params = [{transform_indices = @transform_0, window_bounds = array<i64: 16, 32>}, {pipeline_mode = #tpu.pipeline_mode<synchronous>, transform_indices = @transform_1, window_bounds = array<i64: 32, 64>}, {pipeline_mode = #tpu.pipeline_mode<synchronous>, transform_indices = @transform_2, window_bounds = array<i64: 1, 64>}, {pipeline_mode = #tpu.pipeline_mode<synchronous>, transform_indices = @transform_3, window_bounds = array<i64: 64, 128>}, {pipeline_mode = #tpu.pipeline_mode<synchronous>, transform_indices = @transform_4, window_bounds = array<i64: 1, 128>}, {transform_indices = @transform_5, window_bounds = array<i64: 16, 128>}]} {
    %c0 = arith.constant 0 : index
    %c0_0 = arith.constant 0 : index
    %0 = vector.load %arg1[%c0, %c0_0] : memref<16x32xf32, #tpu.memory_space<vmem>>, vector<16x32xf32>
    %1 = arith.truncf %0 : vector<16x32xf32> to vector<16x32xbf16>
    %c0_1 = arith.constant 0 : index
    %c0_2 = arith.constant 0 : index
    %2 = vector.load %arg2[%c0_1, %c0_2] : memref<32x64xbf16, #tpu.memory_space<vmem>>, vector<32x64xbf16>
    %cst = arith.constant dense<0.000000e+00> : vector<16x64xf32>
    %3 = tpu.matmul %1, %2, %cst {dimension_numbers = #tpu.dot_dimension_numbers<[1], [0], [0], [1], [0, 0, 1, 1], [], []>} : vector<16x32xbf16>, vector<32x64xbf16>, vector<16x64xf32> -> vector<16x64xf32>
    %c0_3 = arith.constant 0 : index
    %c0_4 = arith.constant 0 : index
    %4 = vector.load %arg3[%c0_3, %c0_4] : memref<1x64xf32, #tpu.memory_space<vmem>>, vector<1x64xf32>
    %5 = vector.broadcast %4 : vector<1x64xf32> to vector<16x64xf32>
    %6 = arith.addf %3, %5 : vector<16x64xf32>
    %cst_5 = arith.constant 0.000000e+00 : f32
    %7 = vector.broadcast %cst_5 : f32 to vector<16x64xf32>
    %8 = arith.maximumf %6, %7 : vector<16x64xf32>
    %9 = arith.truncf %8 : vector<16x64xf32> to vector<16x64xbf16>
    %c0_6 = arith.constant 0 : index
    %c0_7 = arith.constant 0 : index
    %10 = vector.load %arg4[%c0_6, %c0_7] : memref<64x128xbf16, #tpu.memory_space<vmem>>, vector<64x128xbf16>
    %cst_8 = arith.constant dense<0.000000e+00> : vector<16x128xf32>
    %11 = tpu.matmul %9, %10, %cst_8 {dimension_numbers = #tpu.dot_dimension_numbers<[1], [0], [0], [1], [0, 0, 1, 1], [], []>} : vector<16x64xbf16>, vector<64x128xbf16>, vector<16x128xf32> -> vector<16x128xf32>
    %c0_9 = arith.constant 0 : index
    %c0_10 = arith.constant 0 : index
    %12 = vector.load %arg5[%c0_9, %c0_10] : memref<1x128xf32, #tpu.memory_space<vmem>>, vector<1x128xf32>
    %13 = vector.broadcast %12 : vector<1x128xf32> to vector<16x128xf32>
    %14 = arith.addf %11, %13 : vector<16x128xf32>
    %cst_11 = arith.constant 0.000000e+00 : f32
    %15 = vector.broadcast %cst_11 : f32 to vector<16x128xf32>
    %16 = arith.subf %15, %14 : vector<16x128xf32>
    %17 = math.exp %16 : vector<16x128xf32>
    %cst_12 = arith.constant 1.000000e+00 : f32
    %18 = vector.broadcast %cst_12 : f32 to vector<16x128xf32>
    %19 = arith.addf %18, %17 : vector<16x128xf32>
    %cst_13 = arith.constant 1.000000e+00 : f32
    %20 = vector.broadcast %cst_13 : f32 to vector<16x128xf32>
    %21 = arith.divf %20, %19 : vector<16x128xf32>
    %22 = arith.truncf %21 : vector<16x128xf32> to vector<16x128xbf16>
    %c0_14 = arith.constant 0 : index
    %c0_15 = arith.constant 0 : index
    %23 = vector.load %arg6[%c0_14, %c0_15] : memref<16x128xbf16, #tpu.memory_space<vmem>>, vector<16x128xbf16>
    tpu.vector_store %arg6[%c0_14, %c0_15], %22 {strides = array<i32>} : memref<16x128xbf16, #tpu.memory_space<vmem>>, vector<16x128xbf16>,
    return
  }
  func.func @transform_0(%arg0: i32) -> (i32, i32) {
    %c0_i32 = arith.constant 0 : i32
    %c0_i32_0 = arith.constant 0 : i32
    return %arg0, %c0_i32 : i32, i32
  }
  func.func @transform_1(%arg0: i32) -> (i32, i32) {
    %c0_i32 = arith.constant 0 : i32
    %c0_i32_0 = arith.constant 0 : i32
    %c0_i32_1 = arith.constant 0 : i32
    return %c0_i32, %c0_i32_0 : i32, i32
  }
  func.func @transform_2(%arg0: i32) -> (i32, i32) {
    %c0_i32 = arith.constant 0 : i32
    %c0_i32_0 = arith.constant 0 : i32
    %c0_i32_1 = arith.constant 0 : i32
    return %c0_i32, %c0_i32_0 : i32, i32
  }
  func.func @transform_3(%arg0: i32) -> (i32, i32) {
    %c0_i32 = arith.constant 0 : i32
    %c0_i32_0 = arith.constant 0 : i32
    %c0_i32_1 = arith.constant 0 : i32
    return %c0_i32, %c0_i32_0 : i32, i32
  }
  func.func @transform_4(%arg0: i32) -> (i32, i32) {
    %c0_i32 = arith.constant 0 : i32
    %c0_i32_0 = arith.constant 0 : i32
    %c0_i32_1 = arith.constant 0 : i32
    return %c0_i32, %c0_i32_0 : i32, i32
  }
  func.func @transform_5(%arg0: i32) -> (i32, i32) {
    %c0_i32 = arith.constant 0 : i32
    %c0_i32_0 = arith.constant 0 : i32
    return %arg0, %c0_i32 : i32, i32
  }
}

</mosaic_0001>

<llo_original>
// kernel: tpu_custom_call.1
$region0: #{tpu_custom_call.1}
  #allocation0 [shape = 'u32[]', space=smem, size = 0x4, offset = 0x4, fixed_abs, tag = 'smem constant byte address 0x4 - core index']
  #allocation1 [shape = 'u32[72,128]{1,0:T(1,128)}', space=vmem, size = 0x9000, scoped, tag = 'internal scratch']
  %s0 = inlined_call_operand.hbm [shape: f32[16,32], index: 0, kind: input, shape index: {}]
  %s1 = inlined_call_operand.hbm [shape: bf16[32,64], index: 1, kind: input, shape index: {}]
  %s2 = inlined_call_operand.vmem [shape: f32[1,64], index: 2, kind: input, shape index: {}]
  %s3 = inlined_call_operand.hbm [shape: bf16[64,128], index: 3, kind: input, shape index: {}]
  %s4 = inlined_call_operand.vmem [shape: f32[1,128], index: 4, kind: input, shape index: {}]
  %s5 = inlined_call_operand.hbm [shape: bf16[16,128], index: 5, kind: output, shape index: {}]
  %s6 = sld [smem:[#allocation0]]
  $region42: #{tpu_custom_call.1} parent=0
    _
  %s8 = ssub.s32 1, %s6
  %s9 = scalar_select 0, %s8, %s6
  $region1: #{tpu_custom_call.1} parent=0
    #allocation2 [shape = 'u8[8192]{0}', space=vmem, size = 0x2000, scoped, tag = 'input window, operand 0, single buffered']
    #allocation3 [shape = 's32[1]{0}', space=sflag, size = 0x4, scoped, tag = 'scoped memory for tpu_custom_call.1']
    #allocation4 [shape = 's32[1]{0}', space=sflag, size = 0x4, scoped, tag = 'scoped memory for tpu_custom_call.1']
    #allocation5 [shape = 'u8[8192]{0}', space=vmem, size = 0x2000, scoped, tag = 'input window, operand 1, single buffered']
    #allocation6 [shape = 's32[1]{0}', space=sflag, size = 0x4, scoped, tag = 'scoped memory for tpu_custom_call.1']
    #allocation7 [shape = 'u8[16384]{0}', space=vmem, size = 0x4000, scoped, tag = 'input window, operand 3, single buffered']
    #allocation8 [shape = 'u8[4096]{0}', space=vmem, size = 0x1000, scoped, tag = 'output window, operand 0, single buffered']
    %10 = vsyncpa [#allocation3], 0
    %11 = vsyncpa [#allocation6], 0
    %12 = vsyncpa [#allocation4], 0
    // Predicated region
    $region2: #{tpu_custom_call.1} parent=1 // pred_check
      _
    $region3: #{tpu_custom_call.1} parent=1 // pred_check_branch
      %14 = sbr.rel (0) target = $region5
    $region4: #{tpu_custom_call.1} parent=1 // pred_region
      %16 = vsyncadd [#allocation3], 0
      %s17 = sshll.u32 %s0, 4
      %s18 = int_to_ptr.hbm [resolvable:$true] %s17
      %s19 = sshll.u32 [#allocation2], 4
      %s20 = int_to_ptr.vmem [resolvable:$true] %s19
      %25 = dma.hbm_to_vmem [thread:$0]  %s18, 256, %s20, [#allocation3], 128, 128, 8
    $region5: #{tpu_custom_call.1} parent=1 // pred_fallthru
      _
    // Predicated region
    $region6: #{tpu_custom_call.1} parent=1 // pred_check
      _
    $region7: #{tpu_custom_call.1} parent=1 // pred_check_branch
      %27 = sbr.rel (0) target = $region9
    $region8: #{tpu_custom_call.1} parent=1 // pred_region
      %29 = vsyncadd [#allocation6], 0
      %s30 = sshll.u32 %s1, 4
      %s31 = int_to_ptr.hbm [resolvable:$true] %s30
      %s32 = sshll.u32 [#allocation5], 4
      %s33 = int_to_ptr.vmem [resolvable:$true] %s32
      %38 = dma.hbm_to_vmem [thread:$0]  %s31, 256, %s33, [#allocation6], 64, 64, 4
    $region9: #{tpu_custom_call.1} parent=1 // pred_fallthru
      _
    // Predicated region
    $region10: #{tpu_custom_call.1} parent=1 // pred_check
      _
    $region11: #{tpu_custom_call.1} parent=1 // pred_check_branch
      %40 = sbr.rel (0) target = $region13
    $region12: #{tpu_custom_call.1} parent=1 // pred_region
      _
    $region13: #{tpu_custom_call.1} parent=1 // pred_fallthru
      _
    // Predicated region
    $region14: #{tpu_custom_call.1} parent=1 // pred_check
      _
    $region15: #{tpu_custom_call.1} parent=1 // pred_check_branch
      %42 = sbr.rel (0) target = $region17
    $region16: #{tpu_custom_call.1} parent=1 // pred_region
      %44 = vsyncadd [#allocation6], 0
      %s45 = sshll.u32 %s3, 4
      %s46 = int_to_ptr.hbm [resolvable:$true] %s45
      %s47 = sshll.u32 [#allocation7], 4
      %s48 = int_to_ptr.vmem [resolvable:$true] %s47
      %53 = dma.hbm_to_vmem [thread:$0]  %s46, 512, %s48, [#allocation6], 64, 64, 4
    $region17: #{tpu_custom_call.1} parent=1 // pred_fallthru
      _
    // Predicated region
    $region18: #{tpu_custom_call.1} parent=1 // pred_check
      _
    $region19: #{tpu_custom_call.1} parent=1 // pred_check_branch
      %55 = sbr.rel (0) target = $region21
    $region20: #{tpu_custom_call.1} parent=1 // pred_region
      _
    $region21: #{tpu_custom_call.1} parent=1 // pred_fallthru
      _
    // Predicated region
    $region22: #{tpu_custom_call.1} parent=1 // pred_check
      _
    $region23: #{tpu_custom_call.1} parent=1 // pred_check_branch
      %57 = sbr.rel (0) target = $region25
    $region24: #{tpu_custom_call.1} parent=1 // pred_region
      %59 = dma.done [#allocation3], 256
    $region25: #{tpu_custom_call.1} parent=1 // pred_fallthru
      _
    // Predicated region
    $region26: #{tpu_custom_call.1} parent=1 // pred_check
      _
    $region27: #{tpu_custom_call.1} parent=1 // pred_check_branch
      %61 = sbr.rel (0) target = $region29
    $region28: #{tpu_custom_call.1} parent=1 // pred_region
      %63 = dma.done [#allocation6], 256
    $region29: #{tpu_custom_call.1} parent=1 // pred_fallthru
      _
    // Predicated region
    $region30: #{tpu_custom_call.1} parent=1 // pred_check
      _
    $region31: #{tpu_custom_call.1} parent=1 // pred_check_branch
      %65 = sbr.rel (0) target = $region33
    $region32: #{tpu_custom_call.1} parent=1 // pred_region
      %67 = dma.done [#allocation6], 512
    $region33: #{tpu_custom_call.1} parent=1 // pred_fallthru
      _
    %v69 = vld [vmem:[#allocation2] sm:$0xff]
    %v70 = vld [vmem:[#allocation2 + $0x8] sm:$0xff]
    %v71 = vpack.c.bf16 %v70, %v69
    %v72 = vld [vmem:[#allocation5] sm:$0xf]
    %v73 = vld [vmem:[#allocation5 + $0x4] sm:$0xf]
    %v74 = vld [vmem:[#allocation5 + $0x8] sm:$0xf]
    %v75 = vld [vmem:[#allocation5 + $0xc] sm:$0xf]
    %v76 = vld [vmem:[%s2] sm:$0x1]
    %v78 = vperm.slane %v76, 0
    %v84 = vunpack.c.l.b16 %v72
    %v85 = vunpack.c.l.b16 %v73
    %v86 = vunpack.c.l.b16 %v74
    %v87 = vunpack.c.l.b16 %v75
    %v88 = vpack.c.b16 %v85, %v84
    %v89 = vpack.c.b16 %v87, %v86
    %vm92 = vcmask 261120
    %v94 = vsel %vm92, %v71, 0
    %96 = vmatpush.bf16.msra.mxu0 0
    %97 = vmatpush.bf16.msra.mxu0 0
    %98 = vmatpush.bf16.msra.mxu0 0
    %99 = vmatpush.bf16.msra.mxu0 0
    %100 = vmatpush.bf16.msra.mxu0 0
    %101 = vmatpush.bf16.msra.mxu0 0
    %102 = vmatpush.bf16.msra.mxu0 %v89
    %103 = vmatpush.bf16.msra.mxu0 %v88
    %104 = vmatmul.bf16.gmra.mxu0 %v94
    %v105 = vpop.f32.mrf.mxu0
    %v106 = vadd.f32 %v78, %v105
    %v107 = vpop.f32.mrf.mxu0
    %v108 = vadd.f32 %v78, %v107
    %109 = vdwg.mxu0
    %v110 = vmax.f32 %v106, 0.0
    %v111 = vmax.f32 %v108, 0.0
    %v112 = vpack.c.bf16 %v111, %v110
    %v113 = vld [vmem:[#allocation7] sm:$0xf]
    %v114 = vld [vmem:[#allocation7 + $0x4] sm:$0xf]
    %v115 = vld [vmem:[#allocation7 + $0x8] sm:$0xf]
    %v116 = vld [vmem:[#allocation7 + $0xc] sm:$0xf]
    %v117 = vld [vmem:[#allocation7 + $0x10] sm:$0xf]
    %v118 = vld [vmem:[#allocation7 + $0x14] sm:$0xf]
    %v119 = vld [vmem:[#allocation7 + $0x18] sm:$0xf]
    %v120 = vld [vmem:[#allocation7 + $0x1c] sm:$0xf]
    %v121 = vld [vmem:[%s4] sm:$0x1]
    %v123 = vperm.slane %v121, 0
    %v133 = vunpack.c.l.b16 %v113
    %v134 = vunpack.c.l.b16 %v114
    %v135 = vunpack.c.l.b16 %v115
    %v136 = vunpack.c.l.b16 %v116
    %v137 = vunpack.c.l.b16 %v117
    %v138 = vunpack.c.l.b16 %v118
    %v139 = vunpack.c.l.b16 %v119
    %v140 = vunpack.c.l.b16 %v120
    %v141 = vpack.c.b16 %v134, %v133
    %v142 = vpack.c.b16 %v136, %v135
    %v143 = vpack.c.b16 %v138, %v137
    %v144 = vpack.c.b16 %v140, %v139
    %vm149 = vcmask 523264
    %v151 = vsel %vm149, %v112, 0
    %153 = vmatpush.bf16.msra.mxu0 0
    %154 = vmatpush.bf16.msra.mxu0 0
    %155 = vmatpush.bf16.msra.mxu0 0
    %156 = vmatpush.bf16.msra.mxu0 0
    %157 = vmatpush.bf16.msra.mxu0 %v144
    %158 = vmatpush.bf16.msra.mxu0 %v143
    %159 = vmatpush.bf16.msra.mxu0 %v142
    %160 = vmatpush.bf16.msra.mxu0 %v141
    %161 = vmatmul.bf16.gmra.mxu0 %v151
    %v162 = vpop.f32.mrf.mxu0
    %v163 = vadd.f32 %v123, %v162
    %v164 = vpop.f32.mrf.mxu0
    %v165 = vadd.f32 %v123, %v164
    %166 = vdwg.mxu0
    %v167 = vsub.f32 0.0, %v163
    %v168 = vsub.f32 0.0, %v165
    %v169 = vmul.f32 %v167, 1.442695
    %v170 = vpow.pop %v169
    %v171 = vmul.f32 %v168, 1.442695
    %v172 = vpow.pop %v171
    %v173 = vadd.f32 %v170, 1.0
    %v174 = vadd.f32 %v172, 1.0
    %v175 = vrcp.pop %v173
    %v176 = vmul.f32 %v173, %v175
    %v177 = vsub.f32 1.0, %v176
    %v178 = vmul.f32 %v175, %v177
    %v179 = vadd.f32 %v175, %v178
    %vm180 = vweird.f32 %v173
    %vm181 = vweird.f32 %v175
    %vm182 = vmor %vm180, %vm181
    %v183 = vsel %vm182, %v175, %v179
    %v184 = vand.u32 2147483647, %v173
    %vm185 = vcmp.eq.f32.partialorder %v184, 8.507059e+37
    %v186 = vand.u32 %v173, 2147483648
    %v187 = vor.u32 1.1754944e-38, %v186
    %v188 = vsel %vm185, %v187, %v183
    %v189 = vmul.f32 1.0, %v188
    %v190 = vrcp.pop %v174
    %v191 = vmul.f32 %v174, %v190
    %v192 = vsub.f32 1.0, %v191
    %v193 = vmul.f32 %v190, %v192
    %v194 = vadd.f32 %v190, %v193
    %vm195 = vweird.f32 %v174
    %vm196 = vweird.f32 %v190
    %vm197 = vmor %vm195, %vm196
    %v198 = vsel %vm197, %v190, %v194
    %v199 = vand.u32 2147483647, %v174
    %vm200 = vcmp.eq.f32.partialorder %v199, 8.507059e+37
    %v201 = vand.u32 %v174, 2147483648
    %v202 = vor.u32 1.1754944e-38, %v201
    %v203 = vsel %vm200, %v202, %v198
    %v204 = vmul.f32 1.0, %v203
    %v205 = vpack.c.bf16 %v189, %v189
    %v206 = vpack.c.bf16 %v204, %v204
    %207 = vst [vmem:[#allocation8] sm:$0xf] %v205
    %208 = vst [vmem:[#allocation8 + $0x4] sm:$0xf] %v206
    // Predicated region
    $region34: #{tpu_custom_call.1} parent=1 // pred_check
      _
    $region35: #{tpu_custom_call.1} parent=1 // pred_check_branch
      %210 = sbr.rel (0) target = $region37
    $region36: #{tpu_custom_call.1} parent=1 // pred_region
      %212 = vsyncadd [#allocation4], 0
      %s213 = sshll.u32 [#allocation8], 4
      %s214 = int_to_ptr.vmem [resolvable:$true] %s213
      %s215 = sshll.u32 %s5, 4
      %s216 = int_to_ptr.hbm [resolvable:$true] %s215
      %221 = dma.vmem_to_hbm [thread:$0]  %s214, 128, %s216, [#allocation4], 64, 64, 4
    $region37: #{tpu_custom_call.1} parent=1 // pred_fallthru
      _
    // Predicated region
    $region38: #{tpu_custom_call.1} parent=1 // pred_check
      _
    $region39: #{tpu_custom_call.1} parent=1 // pred_check_branch
      %223 = sbr.rel (0) target = $region41
    $region40: #{tpu_custom_call.1} parent=1 // pred_region
      %225 = dma.done [#allocation4], 128
    $region41: #{tpu_custom_call.1} parent=1 // pred_fallthru
      _
    %226 = vsyncpa [#allocation3], 1
    %227 = vsyncpa [#allocation6], 1
    %228 = vsyncpa [#allocation4], 1

</llo_original>
